<compile_context>
chip_gen: v6e
topology: v6e:2x2x1
jax: 0.10.0
libtpu: 0.0.40
codegen_flags: <defaults>
</compile_context>

<pallas_src>
import functools

import jax
import jax.numpy as jnp
from jax import lax
from jax.experimental import pallas as pl
from jax.experimental.pallas import tpu as pltpu


_NEG = -1e30       # finite "minus infinity" (Python float -> never a captured constant)
_EPS_SQ = 1e-24    # F.normalize clamps the norm at 1e-12 -> clamp norm^2 at 1e-24


def _round_up(x, m):
    return (x + m - 1) // m * m


def _tpu_vmem_capacity_bytes():
    try:
        return int(pltpu.get_tpu_info().vmem_capacity_bytes)
    except Exception:
        return 64 * 1024 * 1024  # conservative fallback (v7x per-TC VMEM size)


def _cluster_memory_kernel(x_ref, f_ref, tgt_ref, loss_ref,
                           xn_ref, m_ref, l_ref, tl_ref,
                           *, inv_temp, tile_n, num_samples, need_col_mask):
    # x_ref   : (TB, D)  f32   raw inputs tile (resident across the N grid axis)
    # f_ref   : (TN, D)  bf16  feature-bank tile (streamed, double-buffered)
    # tgt_ref : (TB, 1)  i32   target cluster ids
    # loss_ref: (TB, 1)  f32   per-example cross-entropy (written on last N tile)
    # scratch : xn (TB, D) bf16 ; m/l/tl (TB, 1) f32
    j = pl.program_id(1)

    # ---- once per batch tile: normalize, fold 1/temp, init online-LSE state ----
    @pl.when(j == 0)
    def _():
        x = x_ref[...]
        sq = jnp.sum(x * x, axis=1, keepdims=True)
        xn = x * lax.rsqrt(jnp.maximum(sq, _EPS_SQ))
        xn_ref[...] = (xn * inv_temp).astype(xn_ref.dtype)
        m_ref[...] = jnp.full_like(m_ref, _NEG)
        l_ref[...] = jnp.zeros_like(l_ref)
        tl_ref[...] = jnp.zeros_like(tl_ref)

    # ---- logits tile: (TB, TN) = xn . feats^T, contraction on dim 1 (no transpose) ----
    logits = lax.dot_general(
        xn_ref[...], f_ref[...],
        dimension_numbers=(((1,), (1,)), ((), ())),
        preferred_element_type=jnp.float32)

    # (1, TN) lane iota + scalar offset; broadcasting handles the (TB, *) expansion.
    col = lax.broadcasted_iota(jnp.int32, (1, tile_n), 1) + j * tile_n
    if need_col_mask:  # static: only emitted when N is not a multiple of TN
        logits = jnp.where(col < num_samples, logits, _NEG)

    # ---- online logsumexp accumulation (all f32) ----
    m_prev = m_ref[...]
    m_new = jnp.maximum(m_prev, jnp.max(logits, axis=1, keepdims=True))
    alpha = jnp.exp(m_prev - m_new)
    p = jnp.exp(logits - m_new)
    l_ref[...] = alpha * l_ref[...] + jnp.sum(p, axis=1, keepdims=True)
    m_ref[...] = m_new

    # target logit lives in exactly one N tile; it is a raw logit (no rescale needed)
    is_tgt = col == tgt_ref[...]
    tl_ref[...] += jnp.sum(jnp.where(is_tgt, logits, 0.0), axis=1, keepdims=True)

    # ---- finalize per-example loss on last N tile ----
    @pl.when(j == pl.num_programs(1) - 1)
    def _():
        lse = m_ref[...] + jnp.log(l_ref[...])
        loss_ref[...] = lse - tl_ref[...]


def cluster_memory_forward(inputs, targets, features, temp,
                           matmul_dtype=jnp.bfloat16):
    """inputs: (B, D) f32, targets: (B,) int, features: (N, D) -> scalar CE loss."""
    B, D = inputs.shape
    N, D2 = features.shape
    assert D == D2

    # --- batch tile: cover the whole batch up to 256 rows so the feature bank is
    #     streamed from HBM exactly once for typical batch sizes (nb == 1). ---
    TB = min(_round_up(B, 16), 256)
    B_pad = _round_up(B, TB)
    nb = B_pad // TB

    # --- chip-aware feature-tile sizing against the queried VMEM capacity ---
    f_itemsize = jnp.dtype(matmul_dtype).itemsize
    vmem_cap = _tpu_vmem_capacity_bytes()
    usable = int(0.65 * vmem_cap)
    # x is double-buffered by the pipeline even though it only changes with i.
    # TODO(synk): pipeline_mode=pl.Buffered(1) on the x spec would free TB*D*4 bytes.
    fixed = 2 * TB * D * 4 + TB * D * f_itemsize + 64 * 1024
    per_tn = 2 * D * f_itemsize + 4 * TB * 4    # bank dbl-buf rows + f32 logits/p working set
    tn_fit = max(128, (usable - fixed) // max(per_tn, 1))
    TN = max(128, (int(tn_fit) // 128) * 128)
    TN = min(TN, _round_up(N, 128), 8192)
    N_pad = _round_up(N, TN)
    nn = N_pad // TN

    x = inputs.astype(jnp.float32)
    if B_pad != B:
        x = jnp.pad(x, ((0, B_pad - B), (0, 0)))
    # Bank lives in HBM in the MXU dtype (no-op when already stored bf16): halves the
    # dominant HBM stream vs f32 and removes the per-tile cast in the kernel.
    f = features if features.dtype == matmul_dtype else features.astype(matmul_dtype)
    if N_pad != N:
        f = jnp.pad(f, ((0, N_pad - N), (0, 0)))
    tgt = targets.astype(jnp.int32).reshape(B, 1)
    if B_pad != B:
        tgt = jnp.pad(tgt, ((0, B_pad - B), (0, 0)))

    kernel = functools.partial(
        _cluster_memory_kernel,
        inv_temp=float(1.0 / temp), tile_n=TN, num_samples=N,
        need_col_mask=(N_pad != N))

    vmem_limit = int(min(vmem_cap, usable + 8 * 1024 * 1024))

    per_example = pl.pallas_call(
        kernel,
        out_shape=jax.ShapeDtypeStruct((B_pad, 1), jnp.float32),
        grid_spec=pltpu.PrefetchScalarGridSpec(
            num_scalar_prefetch=0,
            grid=(nb, nn),
            in_specs=[
                pl.BlockSpec((TB, D), lambda i, j: (i, 0)),   # inputs (resident over j)
                pl.BlockSpec((TN, D), lambda i, j: (j, 0)),   # feature bank (streamed)
                pl.BlockSpec((TB, 1), lambda i, j: (i, 0)),   # targets
            ],
            out_specs=pl.BlockSpec((TB, 1), lambda i, j: (i, 0)),
            scratch_shapes=[
                pltpu.VMEM((TB, D), matmul_dtype),   # normalized + 1/temp-scaled inputs
                pltpu.VMEM((TB, 1), jnp.float32),    # running max
                pltpu.VMEM((TB, 1), jnp.float32),    # running sum(exp)
                pltpu.VMEM((TB, 1), jnp.float32),    # target logit
            ]),
        compiler_params=pltpu.CompilerParams(
            dimension_semantics=("parallel", "arbitrary"),
            vmem_limit_bytes=vmem_limit),
    )(x, f, tgt)

    return jnp.mean(per_example[:B, 0])


class ClusterMemoryJax:
    """Forward-pass mirror of the PyTorch ClusterMemory module.

    The torch module inits features1/2/3 to zeros; here they are filled with
    unit-norm rows (stored bf16) so the matmul / softmax path is actually exercised
    and the bank streams at half the HBM cost of f32.
    """

    def __init__(self, num_features, num_samples, temp=0.05, momentum=0.2,
                 use_hard=False, key=None, bank_dtype=jnp.bfloat16):
        self.num_features = num_features
        self.num_samples = num_samples
        self.temp = temp
        self.momentum = momentum
        self.use_hard = use_hard
        if key is None:
            key = jax.random.PRNGKey(0)
        k1, k2, k3 = jax.random.split(key, 3)

        def init_bank(k):
            f = jax.random.normal(k, (num_samples, num_features), jnp.float32)
            f = f / jnp.linalg.norm(f, axis=1, keepdims=True)
            return f.astype(bank_dtype)

        self.features1 = init_bank(k1)
        self.features2 = init_bank(k2)
        self.features3 = init_bank(k3)

    def __call__(self, inputs, targets, layer, grad=False):
        # TODO(synk): the momentum feature-bank update (and use_hard median pick)
        # lives in autograd.backward (training-only side effect); forward semantics
        # do not touch it, so it is not implemented here.
        if layer == 0:
            feats = self.features1
        elif layer == 1:
            feats = self.features2
        else:
            feats = self.features3
        return cluster_memory_forward(inputs, targets, feats, self.temp)


if __name__ == "__main__":
    key = jax.random.PRNGKey(0)
    k_in, k_tgt, k_mod = jax.random.split(key, 3)

    B, D, N = 8, 32, 16  # batch, num_features, num_samples (clusters)
    inputs = jax.random.normal(k_in, (B, D), jnp.float32)
    targets = jax.random.randint(k_tgt, (B,), 0, N, jnp.int32)

    memory = ClusterMemoryJax(num_features=D, num_samples=N, temp=0.05,
                              momentum=0.2, use_hard=False, key=k_mod)

    loss = memory(inputs, targets, layer=0, grad=False)
    jax.block_until_ready(loss)

    # pure-JAX reference using the same bf16 MXU operand rounding as the kernel
    sq = jnp.sum(inputs * inputs, axis=1, keepdims=True)
    xn = inputs * jax.lax.rsqrt(jnp.maximum(sq, 1e-24))
    xs = (xn * (1.0 / memory.temp)).astype(jnp.bfloat16)
    fb = memory.features1.astype(jnp.bfloat16)
    logits = jnp.dot(xs, fb.T, preferred_element_type=jnp.float32)
    ref = jnp.mean(
        jax.nn.logsumexp(logits, axis=1) - logits[jnp.arange(B), targets]
    )
    assert jnp.allclose(loss, ref, atol=1e-3, rtol=1e-3), (loss, ref)

    print("KERNEL_OK")
</pallas_src>

<mosaic_0001>
module attributes {stable_mosaic.version = 11 : i64} {
  func.func @_cluster_memory_kernel(%arg0: i32, %arg1: i32, %arg2: memref<16x32xf32, #tpu.memory_space<vmem>>, %arg3: memref<128x32xbf16, #tpu.memory_space<vmem>>, %arg4: memref<16x1xi32, #tpu.memory_space<vmem>>, %arg5: memref<16x1xf32, #tpu.memory_space<vmem>>, %arg6: memref<16x32xbf16, #tpu.memory_space<vmem>>, %arg7: memref<16x1xf32, #tpu.memory_space<vmem>>, %arg8: memref<16x1xf32, #tpu.memory_space<vmem>>, %arg9: memref<16x1xf32, #tpu.memory_space<vmem>>) attributes {dimension_semantics = [#tpu.dimension_semantics<parallel>, #tpu.dimension_semantics<arbitrary>], iteration_bounds = array<i64: 1, 1>, scalar_prefetch = 0 : i64, scratch_operands = 4 : i64, tpu.core_type = #tpu.core_type<tc>, window_params = [{transform_indices = @transform_0, window_bounds = array<i64: 16, 32>}, {transform_indices = @transform_1, window_bounds = array<i64: 128, 32>}, {transform_indices = @transform_2, window_bounds = array<i64: 16, 1>}, {transform_indices = @transform_3, window_bounds = array<i64: 16, 1>}]} {
    %c0_i32 = arith.constant 0 : i32
    %0 = arith.cmpi eq, %arg1, %c0_i32 : i32
    %1 = arith.extui %0 : i1 to i32
    %c0_i32_0 = arith.constant 0 : i32
    %2 = arith.cmpi ne, %1, %c0_i32_0 : i32
    scf.if %2 {
      %c0_25 = arith.constant 0 : index
      %c0_26 = arith.constant 0 : index
      %46 = vector.load %arg2[%c0_25, %c0_26] : memref<16x32xf32, #tpu.memory_space<vmem>>, vector<16x32xf32>
      %47 = arith.mulf %46, %46 : vector<16x32xf32>
      %cst_27 = arith.constant dense<0.000000e+00> : vector<16xf32>
      %48 = vector.multi_reduction <add>, %47, %cst_27 [1] : vector<16x32xf32> to vector<16xf32>
      %49 = vector.shape_cast %48 : vector<16xf32> to vector<16x1xf32>
      %cst_28 = arith.constant 1.000000e-24 : f32
      %50 = vector.broadcast %cst_28 : f32 to vector<16x1xf32>
      %51 = arith.maximumf %49, %50 : vector<16x1xf32>
      %52 = math.rsqrt %51 : vector<16x1xf32>
      %53 = vector.broadcast %52 : vector<16x1xf32> to vector<16x32xf32>
      %54 = arith.mulf %46, %53 : vector<16x32xf32>
      %cst_29 = arith.constant 2.000000e+01 : f32
      %55 = vector.broadcast %cst_29 : f32 to vector<16x32xf32>
      %56 = arith.mulf %54, %55 : vector<16x32xf32>
      %57 = arith.truncf %56 : vector<16x32xf32> to vector<16x32xbf16>
      %c0_30 = arith.constant 0 : index
      %c0_31 = arith.constant 0 : index
      %58 = vector.load %arg6[%c0_30, %c0_31] : memref<16x32xbf16, #tpu.memory_space<vmem>>, vector<16x32xbf16>
      tpu.vector_store %arg6[%c0_30, %c0_31], %57 {strides = array<i32>} : memref<16x32xbf16, #tpu.memory_space<vmem>>, vector<16x32xbf16>,
      %cst_32 = arith.constant -1.000000e+30 : f32
      %59 = vector.broadcast %cst_32 : f32 to vector<16x1xf32>
      %c0_33 = arith.constant 0 : index
      %c0_34 = arith.constant 0 : index
      %60 = vector.load %arg7[%c0_33, %c0_34] : memref<16x1xf32, #tpu.memory_space<vmem>>, vector<16x1xf32>
      tpu.vector_store %arg7[%c0_33, %c0_34], %59 {strides = array<i32>} : memref<16x1xf32, #tpu.memory_space<vmem>>, vector<16x1xf32>,
      %cst_35 = arith.constant 0.000000e+00 : f32
      %61 = vector.broadcast %cst_35 : f32 to vector<16x1xf32>
      %c0_36 = arith.constant 0 : index
      %c0_37 = arith.constant 0 : index
      %62 = vector.load %arg8[%c0_36, %c0_37] : memref<16x1xf32, #tpu.memory_space<vmem>>, vector<16x1xf32>
      tpu.vector_store %arg8[%c0_36, %c0_37], %61 {strides = array<i32>} : memref<16x1xf32, #tpu.memory_space<vmem>>, vector<16x1xf32>,
      %cst_38 = arith.constant 0.000000e+00 : f32
      %63 = vector.broadcast %cst_38 : f32 to vector<16x1xf32>
      %c0_39 = arith.constant 0 : index
      %c0_40 = arith.constant 0 : index
      %64 = vector.load %arg9[%c0_39, %c0_40] : memref<16x1xf32, #tpu.memory_space<vmem>>, vector<16x1xf32>
      tpu.vector_store %arg9[%c0_39, %c0_40], %63 {strides = array<i32>} : memref<16x1xf32, #tpu.memory_space<vmem>>, vector<16x1xf32>,
    } else {
    }
    %c0 = arith.constant 0 : index
    %c0_1 = arith.constant 0 : index
    %3 = vector.load %arg6[%c0, %c0_1] : memref<16x32xbf16, #tpu.memory_space<vmem>>, vector<16x32xbf16>
    %c0_2 = arith.constant 0 : index
    %c0_3 = arith.constant 0 : index
    %4 = vector.load %arg3[%c0_2, %c0_3] : memref<128x32xbf16, #tpu.memory_space<vmem>>, vector<128x32xbf16>
    %cst = arith.constant dense<0.000000e+00> : vector<16x128xf32>
    %5 = tpu.matmul %3, %4, %cst {dimension_numbers = #tpu.dot_dimension_numbers<[1], [1], [0], [0], [0, 0, 1, 0], [], []>} : vector<16x32xbf16>, vector<128x32xbf16>, vector<16x128xf32> -> vector<16x128xf32>
    %6 = tpu.iota {dimensions = array<i32: 1>} : vector<1x128xi32>
    %c128_i32 = arith.constant 128 : i32
    %7 = arith.muli %arg1, %c128_i32 : i32
    %8 = vector.broadcast %7 : i32 to vector<1x128xi32>
    %9 = arith.addi %6, %8 : vector<1x128xi32>
    %c16_i32 = arith.constant 16 : i32
    %10 = vector.broadcast %c16_i32 : i32 to vector<1x128xi32>
    %11 = arith.cmpi slt, %9, %10 : vector<1x128xi32>
    %cst_4 = arith.constant -1.000000e+30 : f32
    %12 = vector.shape_cast %11 : vector<1x128xi1> to vector<1x128xi1>
    %13 = vector.broadcast %12 : vector<1x128xi1> to vector<16x128xi1>
    %14 = vector.broadcast %cst_4 : f32 to vector<16x128xf32>
    %15 = arith.select %13, %5, %14 : vector<16x128xi1>, vector<16x128xf32>
    %c0_5 = arith.constant 0 : index
    %c0_6 = arith.constant 0 : index
    %16 = vector.load %arg7[%c0_5, %c0_6] : memref<16x1xf32, #tpu.memory_space<vmem>>, vector<16x1xf32>
    %cst_7 = arith.constant dense<0xFF800000> : vector<16xf32>
    %17 = vector.multi_reduction <maximumf>, %15, %cst_7 [1] : vector<16x128xf32> to vector<16xf32>
    %18 = vector.shape_cast %17 : vector<16xf32> to vector<16x1xf32>
    %19 = arith.maximumf %16, %18 : vector<16x1xf32>
    %20 = arith.subf %16, %19 : vector<16x1xf32>
    %21 = math.exp %20 : vector<16x1xf32>
    %22 = vector.broadcast %19 : vector<16x1xf32> to vector<16x128xf32>
    %23 = arith.subf %15, %22 : vector<16x128xf32>
    %24 = math.exp %23 : vector<16x128xf32>
    %c0_8 = arith.constant 0 : index
    %c0_9 = arith.constant 0 : index
    %25 = vector.load %arg8[%c0_8, %c0_9] : memref<16x1xf32, #tpu.memory_space<vmem>>, vector<16x1xf32>
    %26 = arith.mulf %21, %25 : vector<16x1xf32>
    %cst_10 = arith.constant dense<0.000000e+00> : vector<16xf32>
    %27 = vector.multi_reduction <add>, %24, %cst_10 [1] : vector<16x128xf32> to vector<16xf32>
    %28 = vector.shape_cast %27 : vector<16xf32> to vector<16x1xf32>
    %29 = arith.addf %26, %28 : vector<16x1xf32>
    %c0_11 = arith.constant 0 : index
    %c0_12 = arith.constant 0 : index
    %30 = vector.load %arg8[%c0_11, %c0_12] : memref<16x1xf32, #tpu.memory_space<vmem>>, vector<16x1xf32>
    tpu.vector_store %arg8[%c0_11, %c0_12], %29 {strides = array<i32>} : memref<16x1xf32, #tpu.memory_space<vmem>>, vector<16x1xf32>,
    %c0_13 = arith.constant 0 : index
    %c0_14 = arith.constant 0 : index
    %31 = vector.load %arg7[%c0_13, %c0_14] : memref<16x1xf32, #tpu.memory_space<vmem>>, vector<16x1xf32>
    tpu.vector_store %arg7[%c0_13, %c0_14], %19 {strides = array<i32>} : memref<16x1xf32, #tpu.memory_space<vmem>>, vector<16x1xf32>,
    %c0_15 = arith.constant 0 : index
    %c0_16 = arith.constant 0 : index
    %32 = vector.load %arg4[%c0_15, %c0_16] : memref<16x1xi32, #tpu.memory_space<vmem>>, vector<16x1xi32>
    %33 = vector.broadcast %9 : vector<1x128xi32> to vector<16x128xi32>
    %34 = vector.broadcast %32 : vector<16x1xi32> to vector<16x128xi32>
    %35 = arith.cmpi eq, %33, %34 : vector<16x128xi32>
    %c0_17 = arith.constant 0 : index
    %c0_18 = arith.constant 0 : index
    %36 = vector.load %arg9[%c0_17, %c0_18] : memref<16x1xf32, #tpu.memory_space<vmem>>, vector<16x1xf32>
    %cst_19 = arith.constant 0.000000e+00 : f32
    %37 = vector.broadcast %cst_19 : f32 to vector<16x128xf32>
    %38 = arith.select %35, %15, %37 : vector<16x128xi1>, vector<16x128xf32>
    %cst_20 = arith.constant dense<0.000000e+00> : vector<16xf32>
    %39 = vector.multi_reduction <add>, %38, %cst_20 [1] : vector<16x128xf32> to vector<16xf32>
    %40 = vector.shape_cast %39 : vector<16xf32> to vector<16x1xf32>
    %41 = arith.addf %36, %40 : vector<16x1xf32>
    %c0_21 = arith.constant 0 : index
    %c0_22 = arith.constant 0 : index
    %42 = vector.load %arg9[%c0_21, %c0_22] : memref<16x1xf32, #tpu.memory_space<vmem>>, vector<16x1xf32>
    tpu.vector_store %arg9[%c0_21, %c0_22], %41 {strides = array<i32>} : memref<16x1xf32, #tpu.memory_space<vmem>>, vector<16x1xf32>,
    %c0_i32_23 = arith.constant 0 : i32
    %43 = arith.cmpi eq, %arg1, %c0_i32_23 : i32
    %44 = arith.extui %43 : i1 to i32
    %c0_i32_24 = arith.constant 0 : i32
    %45 = arith.cmpi ne, %44, %c0_i32_24 : i32
    scf.if %45 {
      %c0_25 = arith.constant 0 : index
      %c0_26 = arith.constant 0 : index
      %46 = vector.load %arg7[%c0_25, %c0_26] : memref<16x1xf32, #tpu.memory_space<vmem>>, vector<16x1xf32>
      %c0_27 = arith.constant 0 : index
      %c0_28 = arith.constant 0 : index
      %47 = vector.load %arg8[%c0_27, %c0_28] : memref<16x1xf32, #tpu.memory_space<vmem>>, vector<16x1xf32>
      %48 = math.log %47 : vector<16x1xf32>
      %49 = arith.addf %46, %48 : vector<16x1xf32>
      %c0_29 = arith.constant 0 : index
      %c0_30 = arith.constant 0 : index
      %50 = vector.load %arg9[%c0_29, %c0_30] : memref<16x1xf32, #tpu.memory_space<vmem>>, vector<16x1xf32>
      %51 = arith.subf %49, %50 : vector<16x1xf32>
      %c0_31 = arith.constant 0 : index
      %c0_32 = arith.constant 0 : index
      %52 = vector.load %arg5[%c0_31, %c0_32] : memref<16x1xf32, #tpu.memory_space<vmem>>, vector<16x1xf32>
      tpu.vector_store %arg5[%c0_31, %c0_32], %51 {strides = array<i32>} : memref<16x1xf32, #tpu.memory_space<vmem>>, vector<16x1xf32>,
    } else {
    }
    return
  }
  func.func @transform_0(%arg0: i32, %arg1: i32) -> (i32, i32) {
    %c0_i32 = arith.constant 0 : i32
    %c0_i32_0 = arith.constant 0 : i32
    return %arg0, %c0_i32 : i32, i32
  }
  func.func @transform_1(%arg0: i32, %arg1: i32) -> (i32, i32) {
    %c0_i32 = arith.constant 0 : i32
    %c0_i32_0 = arith.constant 0 : i32
    return %arg1, %c0_i32 : i32, i32
  }
  func.func @transform_2(%arg0: i32, %arg1: i32) -> (i32, i32) {
    %c0_i32 = arith.constant 0 : i32
    %c0_i32_0 = arith.constant 0 : i32
    return %arg0, %c0_i32 : i32, i32
  }
  func.func @transform_3(%arg0: i32, %arg1: i32) -> (i32, i32) {
    %c0_i32 = arith.constant 0 : i32
    %c0_i32_0 = arith.constant 0 : i32
    return %arg0, %c0_i32 : i32, i32
  }
}

</mosaic_0001>

<llo_original>
// kernel: tpu_custom_call.1
$region0: #{tpu_custom_call.1}
  #allocation0 [shape = 'u32[]', space=smem, size = 0x4, offset = 0x4, fixed_abs, tag = 'smem constant byte address 0x4 - core index']
  #allocation1 [shape = 'u32[144,128]{1,0:T(1,128)}', space=vmem, size = 0x12000, scoped, tag = 'internal scratch']
  #allocation2 [shape = 'bf16[16,32]{1,0:T(8,128)(2,1)}', space=vmem, size = 0x1000, scoped, tag = 'scratch operand']
  #allocation3 [shape = 'f32[16,1]{1,0:T(8,128)}', space=vmem, size = 0x2000, scoped, tag = 'scratch operand']
  #allocation4 [shape = 'f32[16,1]{1,0:T(8,128)}', space=vmem, size = 0x2000, scoped, tag = 'scratch operand']
  #allocation5 [shape = 'f32[16,1]{1,0:T(8,128)}', space=vmem, size = 0x2000, scoped, tag = 'scratch operand']
  %s0 = inlined_call_operand.vmem [shape: f32[16,32], index: 0, kind: input, shape index: {}]
  %s1 = inlined_call_operand.vmem [shape: bf16[128,32], index: 1, kind: input, shape index: {}]
  %s2 = inlined_call_operand.vmem [shape: s32[16,1], index: 2, kind: input, shape index: {}]
  %s3 = inlined_call_operand.vmem [shape: f32[16,1], index: 3, kind: output, shape index: {}]
  %s4 = sld [smem:[#allocation0]]
  $region30: #{tpu_custom_call.1} parent=0
    _
  %s6 = ssub.s32 1, %s4
  %s7 = scalar_select 0, %s6, %s4
  // Predicated region
  $region2: #{tpu_custom_call.1} parent=0 // pred_check
    _
  $region3: #{tpu_custom_call.1} parent=0 // pred_check_branch
    %9 = sbr.rel (0) target = $region5
  $region4: #{tpu_custom_call.1} parent=0 // pred_region
    _
  $region5: #{tpu_custom_call.1} parent=0 // pred_fallthru
    _
  // Predicated region
  $region6: #{tpu_custom_call.1} parent=0 // pred_check
    _
  $region7: #{tpu_custom_call.1} parent=0 // pred_check_branch
    %11 = sbr.rel (0) target = $region9
  $region8: #{tpu_custom_call.1} parent=0 // pred_region
    _
  $region9: #{tpu_custom_call.1} parent=0 // pred_fallthru
    _
  // Predicated region
  $region10: #{tpu_custom_call.1} parent=0 // pred_check
    _
  $region11: #{tpu_custom_call.1} parent=0 // pred_check_branch
    %13 = sbr.rel (0) target = $region13
  $region12: #{tpu_custom_call.1} parent=0 // pred_region
    _
  $region13: #{tpu_custom_call.1} parent=0 // pred_fallthru
    _
  %p15 = scmp.eq.s32.totalorder 0, 0
  // Predicated region
  $region14: #{tpu_custom_call.1} parent=0 // pred_check
    %p16 = pneg %p15
  $region15: #{tpu_custom_call.1} parent=0 // pred_check_branch
    %18 = sbr.rel (%p16) target = $region17
  $region16: #{tpu_custom_call.1} parent=0 // pred_region
    %v19 = vld [vmem:[%s0] sm:$0xff]
    %v20 = vld [vmem:[%s0 + $0x8] sm:$0xff]
    %v21 = vmul.f32 %v19, %v19
    %v22 = vmul.f32 %v20, %v20
    %vm23 = vcmask 261120
    %v24 = vsel %vm23, %v21, 0.0
    %25 = vadd.xlane.f32.xlu0 %v24
    %v26 = vpop.xlane.xlu0 %25
    %v27 = vsel %vm23, %v22, 0.0
    %28 = vadd.xlane.f32.xlu0 %v27
    %v29 = vpop.xlane.xlu0 %28
    %v30 = vmax.f32 %v26, 1e-24
    %v31 = vmax.f32 %v29, 1e-24
    %v32 = vrsqrt.pop %v30
    %v33 = vrsqrt.pop %v31
    %v34 = vmul.f32 %v19, %v32
    %v35 = vmul.f32 %v20, %v33
    %v36 = vmul.f32 %v34, 20.0
    %v37 = vmul.f32 %v35, 20.0
    %v38 = vpack.c.bf16 %v37, %v36
    %v40 = vunpack.c.l.b16 %v38
    %v41 = vunpack.c.h.b16 %v38
    %v42 = vpack.c.b16 %v40, %v40
    %v43 = vpack.c.b16 %v41, %v41
    %vm46 = vcmask 257024
    %47 = vst.msk [vmem:[#allocation2] sm:$0xf] %vm46, %v42
    %48 = vst.msk [vmem:[#allocation2 + $0x4] sm:$0xf] %vm46, %v43
    %vm49 = vcmask 7168
    %50 = vst.msk [vmem:[#allocation3] sm:$0xff] %vm49, -1e+30
    %51 = vst.msk [vmem:[#allocation3 + $0x8] sm:$0xff] %vm49, -1e+30
    %52 = vst.msk [vmem:[#allocation4] sm:$0xff] %vm49, 0.0
    %53 = vst.msk [vmem:[#allocation4 + $0x8] sm:$0xff] %vm49, 0.0
    %54 = vst.msk [vmem:[#allocation5] sm:$0xff] %vm49, 0.0
    %55 = vst.msk [vmem:[#allocation5 + $0x8] sm:$0xff] %vm49, 0.0
  $region17: #{tpu_custom_call.1} parent=0 // pred_fallthru
    _
  %v56 = vld [vmem:[#allocation2] sm:$0xf]
  %v57 = vld [vmem:[#allocation2 + $0x4] sm:$0xf]
  %v58 = vld [vmem:[%s1] sm:$0xf]
  %v59 = vld [vmem:[%s1 + $0x4] sm:$0xf]
  %v60 = vld [vmem:[%s1 + $0x8] sm:$0xf]
  %v61 = vld [vmem:[%s1 + $0xc] sm:$0xf]
  %v62 = vld [vmem:[%s1 + $0x10] sm:$0xf]
  %v63 = vld [vmem:[%s1 + $0x14] sm:$0xf]
  %v64 = vld [vmem:[%s1 + $0x18] sm:$0xf]
  %v65 = vld [vmem:[%s1 + $0x1c] sm:$0xf]
  %v66 = vld [vmem:[%s1 + $0x20] sm:$0xf]
  %v67 = vld [vmem:[%s1 + $0x24] sm:$0xf]
  %v68 = vld [vmem:[%s1 + $0x28] sm:$0xf]
  %v69 = vld [vmem:[%s1 + $0x2c] sm:$0xf]
  %v70 = vld [vmem:[%s1 + $0x30] sm:$0xf]
  %v71 = vld [vmem:[%s1 + $0x34] sm:$0xf]
  %v72 = vld [vmem:[%s1 + $0x38] sm:$0xf]
  %v73 = vld [vmem:[%s1 + $0x3c] sm:$0xf]
  %v76 = vunpack.c.l.b16 %v56
  %v77 = vunpack.c.l.b16 %v57
  %v78 = vpack.c.b16 %v77, %v76
  %v95 = vunpack.c.l.b16 %v58
  %v96 = vunpack.c.l.b16 %v59
  %v97 = vunpack.c.l.b16 %v60
  %v98 = vunpack.c.l.b16 %v61
  %v99 = vunpack.c.l.b16 %v62
  %v100 = vunpack.c.l.b16 %v63
  %v101 = vunpack.c.l.b16 %v64
  %v102 = vunpack.c.l.b16 %v65
  %v103 = vunpack.c.l.b16 %v66
  %v104 = vunpack.c.l.b16 %v67
  %v105 = vunpack.c.l.b16 %v68
  %v106 = vunpack.c.l.b16 %v69
  %v107 = vunpack.c.l.b16 %v70
  %v108 = vunpack.c.l.b16 %v71
  %v109 = vunpack.c.l.b16 %v72
  %v110 = vunpack.c.l.b16 %v73
  %v111 = vpack.c.b16 %v96, %v95
  %v112 = vpack.c.b16 %v98, %v97
  %v113 = vpack.c.b16 %v100, %v99
  %v114 = vpack.c.b16 %v102, %v101
  %v115 = vpack.c.b16 %v104, %v103
  %v116 = vpack.c.b16 %v106, %v105
  %v117 = vpack.c.b16 %v108, %v107
  %v118 = vpack.c.b16 %v110, %v109
  %vm119 = vcmask 261120
  %v121 = vsel %vm119, %v78, 0
  %v124 = vsel %vm119, %v111, 0
  %v127 = vsel %vm119, %v112, 0
  %v130 = vsel %vm119, %v113, 0
  %v133 = vsel %vm119, %v114, 0
  %v136 = vsel %vm119, %v115, 0
  %v139 = vsel %vm119, %v116, 0
  %v142 = vsel %vm119, %v117, 0
  %v145 = vsel %vm119, %v118, 0
  %147 = vmatprep.subr.bf16.mxu0 0
  %148 = vmatpush1.bf16.xpose.msra.mxu0 %v145
  %149 = vmatprep.subr.bf16.mxu0 0
  %150 = vmatpush1.bf16.xpose.msra.mxu0 %v142
  %151 = vmatprep.subr.bf16.mxu0 0
  %152 = vmatpush1.bf16.xpose.msra.mxu0 %v139
  %153 = vmatprep.subr.bf16.mxu0 0
  %154 = vmatpush1.bf16.xpose.msra.mxu0 %v136
  %155 = vmatprep.subr.bf16.mxu0 0
  %156 = vmatpush1.bf16.xpose.msra.mxu0 %v133
  %157 = vmatprep.subr.bf16.mxu0 0
  %158 = vmatpush1.bf16.xpose.msra.mxu0 %v130
  %159 = vmatprep.subr.bf16.mxu0 0
  %160 = vmatpush1.bf16.xpose.msra.mxu0 %v127
  %161 = vmatprep.subr.bf16.mxu0 0
  %162 = vmatpush1.bf16.xpose.msra.mxu0 %v124
  %163 = vmatprep.subr.bf16.mxu0 0
  %164 = vmatpush2.bf16.xpose.msra.mxu0 0
  %165 = vmatprep.subr.bf16.mxu0 0
  %166 = vmatpush2.bf16.xpose.msra.mxu0 0
  %167 = vmatprep.subr.bf16.mxu0 0
  %168 = vmatpush2.bf16.xpose.msra.mxu0 0
  %169 = vmatprep.subr.bf16.mxu0 0
  %170 = vmatpush2.bf16.xpose.msra.mxu0 0
  %171 = vmatprep.subr.bf16.mxu0 0
  %172 = vmatpush2.bf16.xpose.msra.mxu0 0
  %173 = vmatprep.subr.bf16.mxu0 0
  %174 = vmatpush2.bf16.xpose.msra.mxu0 0
  %175 = vmatprep.subr.bf16.mxu0 0
  %176 = vmatpush2.bf16.xpose.msra.mxu0 0
  %177 = vmatprep.subr.bf16.mxu0 0
  %178 = vmatpush2.bf16.xpose.msra.mxu0 0
  %179 = vmatprep.mubr.bf16.mxu0 0
  %180 = vmatmul.mubr.bf16.gmra.mxu0 %v121
  %v181 = vpop.f32.mrf.mxu0
  %v182 = vadd.f32 0.0, %v181
  %v183 = vpop.f32.mrf.mxu0
  %v184 = vpop.f32.mrf.mxu0
  %v185 = vadd.f32 0.0, %v184
  %v186 = vpop.f32.mrf.mxu0
  %187 = vdwg.mxu0
  %v188 = vlaneseq
  %v189 = vand.u32 %v188, 127
  %s190 = smul.u32 0, 128
  %v191 = vstv %s190
  %v192 = vadd.s32 %v189, %v191
  %vm193 = vcmp.lt.s32.totalorder %v192, 16
  %v194 = vsel %vm193, 1, 0
  %vm195 = vcmp.eq.s32.totalorder %v194, 1
  %v196 = vsel %vm195, %v182, -1e+30
  %v197 = vsel %vm195, %v185, -1e+30
  %v198 = vld [vmem:[#allocation3] sm:$0xff]
  %v199 = vld [vmem:[#allocation3 + $0x8] sm:$0xff]
  %200 = vmax.xlane.f32.xlu0 %v196
  %v201 = vpop.xlane.xlu0 %200
  %202 = vmax.xlane.f32.xlu0 %v197
  %v203 = vpop.xlane.xlu0 %202
  %v204 = vmax.f32 %v198, %v201
  %v205 = vmax.f32 %v199, %v203
  %v206 = vsub.f32 %v198, %v204
  %v207 = vsub.f32 %v199, %v205
  %v208 = vmul.f32 %v206, 1.442695
  %v209 = vpow.pop %v208
  %v210 = vmul.f32 %v207, 1.442695
  %v211 = vpow.pop %v210
  %213 = vset.pattern.permute.xlu0 0
  %214 = vperm.xlu0 %213, %v204
  %v215 = vpop.permute.xlu0 %214
  %218 = vset.pattern.permute.xlu0 0
  %219 = vperm.xlu0 %218, %v205
  %v220 = vpop.permute.xlu0 %219
  %v222 = vsub.f32 %v196, %v215
  %v223 = vsub.f32 %v197, %v220
  %v224 = vmul.f32 %v222, 1.442695
  %v225 = vpow.pop %v224
  %v226 = vmul.f32 %v223, 1.442695
  %v227 = vpow.pop %v226
  %v228 = vld [vmem:[#allocation4] sm:$0xff]
  %v229 = vld [vmem:[#allocation4 + $0x8] sm:$0xff]
  %v230 = vmul.f32 %v209, %v228
  %v231 = vmul.f32 %v211, %v229
  %232 = vadd.xlane.f32.xlu0 %v225
  %v233 = vpop.xlane.xlu0 %232
  %234 = vadd.xlane.f32.xlu0 %v227
  %v235 = vpop.xlane.xlu0 %234
  %v236 = vadd.f32 %v230, %v233
  %v237 = vadd.f32 %v231, %v235
  %vm238 = vcmask 7168
  %239 = vst.msk [vmem:[#allocation4] sm:$0xff] %vm238, %v236
  %240 = vst.msk [vmem:[#allocation4 + $0x8] sm:$0xff] %vm238, %v237
  %241 = vst.msk [vmem:[#allocation3] sm:$0xff] %vm238, %v204
  %242 = vst.msk [vmem:[#allocation3 + $0x8] sm:$0xff] %vm238, %v205
  %v243 = vld [vmem:[%s2] sm:$0xff]
  %v244 = vld [vmem:[%s2 + $0x8] sm:$0xff]
  %245 = vset.pattern.permute.xlu0 0
  %246 = vperm.xlu0 %245, %v243
  %v247 = vpop.permute.xlu0 %246
  %248 = vset.pattern.permute.xlu0 0
  %249 = vperm.xlu0 %248, %v244
  %v250 = vpop.permute.xlu0 %249
  %vm251 = vcmp.eq.s32.totalorder %v192, %v247
  %vm252 = vcmp.eq.s32.totalorder %v192, %v250
  %v253 = vld [vmem:[#allocation5] sm:$0xff]
  %v254 = vld [vmem:[#allocation5 + $0x8] sm:$0xff]
  %v255 = vsel %vm251, %v196, 0.0
  %v256 = vsel %vm252, %v197, 0.0
  %257 = vadd.xlane.f32.xlu0 %v255
  %v258 = vpop.xlane.xlu0 %257
  %259 = vadd.xlane.f32.xlu0 %v256
  %v260 = vpop.xlane.xlu0 %259
  %v261 = vadd.f32 %v253, %v258
  %v262 = vadd.f32 %v254, %v260
  %263 = vst.msk [vmem:[#allocation5] sm:$0xff] %vm238, %v261
  %264 = vst.msk [vmem:[#allocation5 + $0x8] sm:$0xff] %vm238, %v262
  // Predicated region
  $region18: #{tpu_custom_call.1} parent=0 // pred_check
    %p265 = pneg %p15
  $region19: #{tpu_custom_call.1} parent=0 // pred_check_branch
    %267 = sbr.rel (%p265) target = $region21
  $region20: #{tpu_custom_call.1} parent=0 // pred_region
    %v268 = vld [vmem:[#allocation3] sm:$0xff]
    %v269 = vld [vmem:[#allocation3 + $0x8] sm:$0xff]
    %v270 = vld [vmem:[#allocation4] sm:$0xff]
    %v271 = vld [vmem:[#allocation4 + $0x8] sm:$0xff]
    %v272 = vlog2.pop %v270
    %v273 = vmul.f32 %v272, 0.6931472
    %v274 = vlog2.pop %v271
    %v275 = vmul.f32 %v274, 0.6931472
    %v276 = vadd.f32 %v268, %v273
    %v277 = vadd.f32 %v269, %v275
    %v278 = vld [vmem:[#allocation5] sm:$0xff]
    %v279 = vld [vmem:[#allocation5 + $0x8] sm:$0xff]
    %v280 = vsub.f32 %v276, %v278
    %v281 = vsub.f32 %v277, %v279
    %282 = vst.msk [vmem:[%s3] sm:$0xff] %vm238, %v280
    %283 = vst.msk [vmem:[%s3 + $0x8] sm:$0xff] %vm238, %v281
  $region21: #{tpu_custom_call.1} parent=0 // pred_fallthru
    _
  // Predicated region
  $region22: #{tpu_custom_call.1} parent=0 // pred_check
    _
  $region23: #{tpu_custom_call.1} parent=0 // pred_check_branch
    %285 = sbr.rel (0) target = $region25
  $region24: #{tpu_custom_call.1} parent=0 // pred_region
    _
  $region25: #{tpu_custom_call.1} parent=0 // pred_fallthru
    _
  // Predicated region
  $region26: #{tpu_custom_call.1} parent=0 // pred_check
    _
  $region27: #{tpu_custom_call.1} parent=0 // pred_check_branch
    %287 = sbr.rel (0) target = $region29
  $region28: #{tpu_custom_call.1} parent=0 // pred_region
    _
  $region29: #{tpu_custom_call.1} parent=0 // pred_fallthru
    _

</llo_original>
